<compile_context>
chip_gen: v7x
topology: tpu7x:2x2x1
jax: 0.10.0
libtpu: 0.0.40
codegen_flags: <defaults>
</compile_context>

<pallas_src>
import math
import numpy as np
import jax
import jax.numpy as jnp
from jax import lax
from jax.experimental import pallas as pl
from jax.experimental.pallas import tpu as pltpu

# ---- model hyper-parameters (small, consistent with the module) -------------
GLOVE_DIM = 32
VOCAB_SIZE = 50
NUM_CHANNELS = (8, 8)
KERNEL_SIZES = (3, 4)
OUTPUT_SIZE = 16
BATCH = 2
SEQ_LEN = 12
TASK_NUM = 2                    # private_layer copies share weights -> no-op

KMIN = min(KERNEL_SIZES)
KMAX = max(KERNEL_SIZES)
LOUT = SEQ_LEN - KMIN + 1                 # 10 positions for the narrowest kernel
LOUT_PAD = ((LOUT + 7) // 8) * 8          # 16: sublane-aligned rows per sequence
C_TOTAL = sum(NUM_CHANNELS)               # 16
NMAX = max(C_TOTAL, OUTPUT_SIZE)          # 16: packed-parameter lane width
KV = KMAX * VOCAB_SIZE                    # 200: fused one-hot width (tap-major)
SENTINEL = KV                             # id that never matches any one-hot lane
M_ROWS = BATCH * LOUT_PAD                 # 32 im2col rows
NEG_BIG = -1e30                           # python float only (never captured)

# Packed-parameter row offsets (all multiples of 8 -> tile-aligned row slices).
R_FOLD = 0                                # (KV, C_TOTAL) folded gather+conv weight
R_BCONV = 200                             # 1 row: conv bias
R_WFC = 208                               # (C_TOTAL, OUTPUT_SIZE) fc weight (transposed)
R_BFC = 224                               # 1 row: fc bias
R_MASK = 232                              # (M_ROWS, C_TOTAL) additive 0 / -1e30 mask
PACK_ROWS = R_MASK + M_ROWS               # 264

_INV_SQRT2 = 0.7071067811865476


def _erf_f32(x):
    """float32 erf via Abramowitz & Stegun 7.1.26 (|err| <= 1.5e-7).

    Uses only exp / div / mul / add / where so it always lowers in Mosaic.
    """
    a1, a2, a3, a4, a5 = (0.254829592, -0.284496736, 1.421413741,
                          -1.453152027, 1.061405429)
    p = 0.3275911
    z = jnp.abs(x)
    t = 1.0 / (1.0 + p * z)
    poly = ((((a5 * t + a4) * t + a3) * t + a2) * t + a1) * t
    pos = 1.0 - poly * jnp.exp(-z * z)
    return jnp.where(x < 0.0, -pos, pos)


def _gelu_exact(x):
    # F.gelu default (erf-based), not the tanh approximation.
    return 0.5 * x * (1.0 + _erf_f32(x * _INV_SQRT2))


def mtcnn_kernel(ids_ref, pack_ref, out_ref):
    """Fused gather + conv1d-bank + GELU + global max-pool + fc.

    ids_ref  : (M_ROWS, KMAX) int32   per-window token ids; tap j is offset by
               j*VOCAB_SIZE, invalid taps/positions use SENTINEL (>= KV).
    pack_ref : (PACK_ROWS, NMAX) f32  packed parameters (see row offsets above).
    out_ref  : (BATCH, OUTPUT_SIZE) f32
    """
    # --- 1. one-hot over the fused (tap, vocab) axis: (M, KV) ----------------
    lane = lax.broadcasted_iota(jnp.int32, (M_ROWS, KV), 1)
    oh = jnp.where(ids_ref[:, 0:1] == lane, 1.0, 0.0)
    for j in range(1, KMAX):                       # static unroll (KMAX-1 adds)
        oh = oh + jnp.where(ids_ref[:, j:j + 1] == lane, 1.0, 0.0)

    # --- 2. single MXU push: gather + im2col + conv bank in one matmul -------
    w_fold = pack_ref[R_FOLD:R_FOLD + KV, 0:C_TOTAL]           # (200, 16)
    b_conv = pack_ref[R_BCONV:R_BCONV + 1, 0:C_TOTAL]          # (1, 16)
    acc = jnp.dot(oh, w_fold, preferred_element_type=jnp.float32) + b_conv

    # --- 3. GELU (erf), static additive mask, sublane-aligned max-pool -------
    g = _gelu_exact(acc) + pack_ref[R_MASK:R_MASK + M_ROWS, 0:C_TOTAL]
    feat = jnp.max(g.reshape(BATCH, LOUT_PAD, C_TOTAL), axis=1)  # (B, C_TOTAL)

    # --- 4. fc head -----------------------------------------------------------
    w_fc = pack_ref[R_WFC:R_WFC + C_TOTAL, 0:OUTPUT_SIZE]      # (16, 16)
    b_fc = pack_ref[R_BFC:R_BFC + 1, 0:OUTPUT_SIZE]            # (1, 16)
    out_ref[...] = jnp.dot(feat, w_fc,
                           preferred_element_type=jnp.float32) + b_fc


def _build_window_ids(x_ids):
    """(B, L) int32 token ids -> (B*LOUT_PAD, KMAX) tap-offset window ids."""
    B, L = x_ids.shape
    pad_len = LOUT_PAD + KMAX - 1 - L
    xp = jnp.pad(x_ids.astype(jnp.int32), ((0, 0), (0, pad_len)),
                 constant_values=SENTINEL)        # pad + j*V stays >= KV for all j
    taps = [xp[:, j:j + LOUT_PAD] + j * VOCAB_SIZE for j in range(KMAX)]
    ids = jnp.stack(taps, axis=-1)                # (B, LOUT_PAD, KMAX)
    return ids.reshape(B * LOUT_PAD, KMAX)


@jax.jit
def mtcnn_forward(x_ids, pack):
    """x_ids: (B, L) int32 token ids.  Returns (B, OUTPUT_SIZE) f32."""
    B = x_ids.shape[0]
    ids = _build_window_ids(x_ids)

    flops = (2 * M_ROWS * KV * C_TOTAL            # fused gather+conv matmul
             + 2 * B * C_TOTAL * OUTPUT_SIZE)     # fc
    bytes_accessed = 4 * (ids.size + pack.size + B * OUTPUT_SIZE)
    ce = pl.CostEstimate(flops=flops,
                         transcendentals=M_ROWS * C_TOTAL,   # exp inside erf
                         bytes_accessed=bytes_accessed)

    vmem = pl.BlockSpec(memory_space=pltpu.MemorySpace.VMEM)
    return pl.pallas_call(
        mtcnn_kernel,
        out_shape=jax.ShapeDtypeStruct((B, OUTPUT_SIZE), jnp.float32),
        in_specs=[vmem, vmem],
        out_specs=vmem,
        cost_estimate=ce,
    )(ids, pack)


def generate_forward(params, inputs):
    """Mirrors generate.forward: returns [target, None, None].

    inputs: {'x': int32 (B, L) token ids, 'task_id': int}
    task_id is a no-op (all private_layer copies share parameters in the
    reference), and nn.Dropout is unused in the reference forward.
    """
    # TODO(synk): get_embedding's word2id / GloVe-file loading has no in-kernel
    # equivalent; this script consumes integer token ids and a random table.
    x = inputs['x']
    target = mtcnn_forward(x, params['pack'])
    return [target, None, None]


def init_params(key):
    keys = jax.random.split(key, 8)
    # Embedding table (frozen GloVe stand-in; nn.Embedding default init N(0,1)).
    glove = jax.random.normal(keys[0], (VOCAB_SIZE, GLOVE_DIM), jnp.float32)

    conv_ws = []
    for i, (c, k) in enumerate(zip(NUM_CHANNELS, KERNEL_SIZES)):
        # kaiming_uniform_ on (C, D, k): fan_in = D*k, bound = sqrt(6 / fan_in)
        bound = math.sqrt(6.0 / (GLOVE_DIM * k))
        conv_ws.append(jax.random.uniform(keys[1 + i], (c, GLOVE_DIM, k),
                                          jnp.float32, -bound, bound))
    # conv bias: uniform_(0, 0) == 0

    # xavier_normal_ on (output_size, sum_c); Linear default bias init.
    std = math.sqrt(2.0 / (C_TOTAL + OUTPUT_SIZE))
    fc_w = std * jax.random.normal(keys[5], (OUTPUT_SIZE, C_TOTAL), jnp.float32)
    b_bound = 1.0 / math.sqrt(C_TOTAL)
    fc_b = jax.random.uniform(keys[6], (OUTPUT_SIZE,), jnp.float32,
                              -b_bound, b_bound)

    # ---- fold frozen glove into the conv weights and pack all parameters ----
    glove_np = np.asarray(glove, np.float32)
    pack = np.zeros((PACK_ROWS, NMAX), np.float32)
    off = 0
    for w, k in zip(conv_ws, KERNEL_SIZES):
        w_np = np.asarray(w, np.float32)                  # (c, D, k)
        c = w_np.shape[0]
        for j in range(k):                                # tap-major blocks of V
            # fold[j*V + v, ch] = sum_d glove[v, d] * w[ch, d, j]
            pack[R_FOLD + j * VOCAB_SIZE:R_FOLD + (j + 1) * VOCAB_SIZE,
                 off:off + c] = glove_np @ w_np[:, :, j].T
        off += c
    # row R_BCONV (conv bias) stays zero.
    pack[R_WFC:R_WFC + C_TOTAL, :OUTPUT_SIZE] = np.asarray(fc_w, np.float32).T
    pack[R_BFC, :OUTPUT_SIZE] = np.asarray(fc_b, np.float32)

    # Additive max-pool mask: 0 on valid conv positions, -1e30 elsewhere.
    mask = np.zeros((LOUT_PAD, C_TOTAL), np.float32)
    off = 0
    for c, k in zip(NUM_CHANNELS, KERNEL_SIZES):
        mask[SEQ_LEN - k + 1:, off:off + c] = NEG_BIG
        off += c
    pack[R_MASK:R_MASK + M_ROWS, :C_TOTAL] = np.tile(mask, (BATCH, 1))

    params = {'pack': jnp.asarray(pack)}
    raw = {'glove': glove, 'conv_ws': conv_ws, 'fc_w': fc_w, 'fc_b': fc_b}
    return params, raw


def reference_forward(raw, x_ids):
    """Pure-JAX replica of the PyTorch forward, for a correctness check."""
    emb = raw['glove'][x_ids]                          # (B, L, D)
    h = jnp.transpose(emb, (0, 2, 1))                  # (B, D, L)
    feats = []
    for w, k in zip(raw['conv_ws'], KERNEL_SIZES):
        outs = []
        for p in range(SEQ_LEN - k + 1):
            outs.append(jnp.einsum('cdj,bdj->bc', w, h[:, :, p:p + k],
                                   precision=jax.lax.Precision.HIGHEST))
        conv = jnp.stack(outs, axis=-1)                # (B, c, P); bias == 0
        act = jax.nn.gelu(conv, approximate=False)     # exact (erf) GELU
        feats.append(jnp.max(act, axis=-1))            # AdaptiveMaxPool1d(1)
    feat = jnp.concatenate(feats, axis=1)              # (B, C_TOTAL)
    return feat @ raw['fc_w'].T + raw['fc_b']


if __name__ == "__main__":
    key = jax.random.PRNGKey(0)
    pkey, xkey = jax.random.split(key)
    params, raw = init_params(pkey)

    x = jax.random.randint(xkey, (BATCH, SEQ_LEN), 0, VOCAB_SIZE, jnp.int32)
    inputs = {'x': x, 'task_id': 0}

    target, _, _ = generate_forward(params, inputs)
    target = jax.block_until_ready(target)

    assert target.shape == (BATCH, OUTPUT_SIZE), target.shape
    assert target.dtype == jnp.float32
    assert bool(jnp.all(jnp.isfinite(target)))

    ref = jax.block_until_ready(reference_forward(raw, x))
    max_err = float(jnp.max(jnp.abs(target - ref)))
    assert max_err < 5e-2, f"kernel/reference mismatch: max |err| = {max_err}"

    print("KERNEL_OK")
</pallas_src>

<mosaic_0001>
module attributes {stable_mosaic.version = 11 : i64} {
  func.func @mtcnn_kernel(%arg0: memref<32x4xi32, #tpu.memory_space<vmem>>, %arg1: memref<264x16xf32, #tpu.memory_space<vmem>>, %arg2: memref<2x16xf32, #tpu.memory_space<vmem>>) attributes {dimension_semantics = [], scalar_prefetch = 0 : i64, scratch_operands = 0 : i64, tpu.core_type = #tpu.core_type<tc>} {
    %0 = tpu.iota {dimensions = array<i32: 1>} : vector<32x200xi32>
    %c0 = arith.constant 0 : index
    %c0_0 = arith.constant 0 : index
    %1 = vector.load %arg0[%c0, %c0_0] : memref<32x4xi32, #tpu.memory_space<vmem>>, vector<32x1xi32>
    %2 = vector.broadcast %1 : vector<32x1xi32> to vector<32x200xi32>
    %3 = arith.cmpi eq, %2, %0 : vector<32x200xi32>
    %cst = arith.constant 1.000000e+00 : f32
    %cst_1 = arith.constant 0.000000e+00 : f32
    %4 = vector.broadcast %cst : f32 to vector<32x200xf32>
    %5 = vector.broadcast %cst_1 : f32 to vector<32x200xf32>
    %6 = arith.select %3, %4, %5 : vector<32x200xi1>, vector<32x200xf32>
    %c0_2 = arith.constant 0 : index
    %c1 = arith.constant 1 : index
    %7 = vector.load %arg0[%c0_2, %c1] : memref<32x4xi32, #tpu.memory_space<vmem>>, vector<32x1xi32>
    %8 = vector.broadcast %7 : vector<32x1xi32> to vector<32x200xi32>
    %9 = arith.cmpi eq, %8, %0 : vector<32x200xi32>
    %cst_3 = arith.constant 1.000000e+00 : f32
    %cst_4 = arith.constant 0.000000e+00 : f32
    %10 = vector.broadcast %cst_3 : f32 to vector<32x200xf32>
    %11 = vector.broadcast %cst_4 : f32 to vector<32x200xf32>
    %12 = arith.select %9, %10, %11 : vector<32x200xi1>, vector<32x200xf32>
    %13 = arith.addf %6, %12 : vector<32x200xf32>
    %c0_5 = arith.constant 0 : index
    %c2 = arith.constant 2 : index
    %14 = vector.load %arg0[%c0_5, %c2] : memref<32x4xi32, #tpu.memory_space<vmem>>, vector<32x1xi32>
    %15 = vector.broadcast %14 : vector<32x1xi32> to vector<32x200xi32>
    %16 = arith.cmpi eq, %15, %0 : vector<32x200xi32>
    %cst_6 = arith.constant 1.000000e+00 : f32
    %cst_7 = arith.constant 0.000000e+00 : f32
    %17 = vector.broadcast %cst_6 : f32 to vector<32x200xf32>
    %18 = vector.broadcast %cst_7 : f32 to vector<32x200xf32>
    %19 = arith.select %16, %17, %18 : vector<32x200xi1>, vector<32x200xf32>
    %20 = arith.addf %13, %19 : vector<32x200xf32>
    %c0_8 = arith.constant 0 : index
    %c3 = arith.constant 3 : index
    %21 = vector.load %arg0[%c0_8, %c3] : memref<32x4xi32, #tpu.memory_space<vmem>>, vector<32x1xi32>
    %22 = vector.broadcast %21 : vector<32x1xi32> to vector<32x200xi32>
    %23 = arith.cmpi eq, %22, %0 : vector<32x200xi32>
    %cst_9 = arith.constant 1.000000e+00 : f32
    %cst_10 = arith.constant 0.000000e+00 : f32
    %24 = vector.broadcast %cst_9 : f32 to vector<32x200xf32>
    %25 = vector.broadcast %cst_10 : f32 to vector<32x200xf32>
    %26 = arith.select %23, %24, %25 : vector<32x200xi1>, vector<32x200xf32>
    %27 = arith.addf %20, %26 : vector<32x200xf32>
    %c0_11 = arith.constant 0 : index
    %c0_12 = arith.constant 0 : index
    %28 = vector.load %arg1[%c0_11, %c0_12] : memref<264x16xf32, #tpu.memory_space<vmem>>, vector<200x16xf32>
    %c200 = arith.constant 200 : index
    %c0_13 = arith.constant 0 : index
    %29 = vector.load %arg1[%c200, %c0_13] : memref<264x16xf32, #tpu.memory_space<vmem>>, vector<1x16xf32>
    %cst_14 = arith.constant dense<0.000000e+00> : vector<32x16xf32>
    %30 = tpu.matmul %27, %28, %cst_14 {dimension_numbers = #tpu.dot_dimension_numbers<[1], [0], [0], [1], [0, 0, 1, 1], [], []>} : vector<32x200xf32>, vector<200x16xf32>, vector<32x16xf32> -> vector<32x16xf32>
    %31 = vector.broadcast %29 : vector<1x16xf32> to vector<32x16xf32>
    %32 = arith.addf %30, %31 : vector<32x16xf32>
    %cst_15 = arith.constant 5.000000e-01 : f32
    %33 = vector.broadcast %cst_15 : f32 to vector<32x16xf32>
    %34 = arith.mulf %33, %32 : vector<32x16xf32>
    %cst_16 = arith.constant 0.707106769 : f32
    %35 = vector.broadcast %cst_16 : f32 to vector<32x16xf32>
    %36 = arith.mulf %32, %35 : vector<32x16xf32>
    %37 = math.absf %36 : vector<32x16xf32>
    %cst_17 = arith.constant 0.327591091 : f32
    %38 = vector.broadcast %cst_17 : f32 to vector<32x16xf32>
    %39 = arith.mulf %38, %37 : vector<32x16xf32>
    %cst_18 = arith.constant 1.000000e+00 : f32
    %40 = vector.broadcast %cst_18 : f32 to vector<32x16xf32>
    %41 = arith.addf %40, %39 : vector<32x16xf32>
    %cst_19 = arith.constant 1.000000e+00 : f32
    %42 = vector.broadcast %cst_19 : f32 to vector<32x16xf32>
    %43 = arith.divf %42, %41 : vector<32x16xf32>
    %cst_20 = arith.constant 1.06140542 : f32
    %44 = vector.broadcast %cst_20 : f32 to vector<32x16xf32>
    %45 = arith.mulf %44, %43 : vector<32x16xf32>
    %cst_21 = arith.constant -1.45315206 : f32
    %46 = vector.broadcast %cst_21 : f32 to vector<32x16xf32>
    %47 = arith.addf %45, %46 : vector<32x16xf32>
    %48 = arith.mulf %47, %43 : vector<32x16xf32>
    %cst_22 = arith.constant 1.42141378 : f32
    %49 = vector.broadcast %cst_22 : f32 to vector<32x16xf32>
    %50 = arith.addf %48, %49 : vector<32x16xf32>
    %51 = arith.mulf %50, %43 : vector<32x16xf32>
    %cst_23 = arith.constant -0.284496725 : f32
    %52 = vector.broadcast %cst_23 : f32 to vector<32x16xf32>
    %53 = arith.addf %51, %52 : vector<32x16xf32>
    %54 = arith.mulf %53, %43 : vector<32x16xf32>
    %cst_24 = arith.constant 0.254829586 : f32
    %55 = vector.broadcast %cst_24 : f32 to vector<32x16xf32>
    %56 = arith.addf %54, %55 : vector<32x16xf32>
    %57 = arith.mulf %56, %43 : vector<32x16xf32>
    %cst_25 = arith.constant 0.000000e+00 : f32
    %58 = vector.broadcast %cst_25 : f32 to vector<32x16xf32>
    %59 = arith.subf %58, %37 : vector<32x16xf32>
    %60 = arith.mulf %59, %37 : vector<32x16xf32>
    %61 = math.exp %60 : vector<32x16xf32>
    %62 = arith.mulf %57, %61 : vector<32x16xf32>
    %cst_26 = arith.constant 1.000000e+00 : f32
    %63 = vector.broadcast %cst_26 : f32 to vector<32x16xf32>
    %64 = arith.subf %63, %62 : vector<32x16xf32>
    %cst_27 = arith.constant 0.000000e+00 : f32
    %65 = vector.broadcast %cst_27 : f32 to vector<32x16xf32>
    %66 = arith.cmpf olt, %36, %65 : vector<32x16xf32>
    %cst_28 = arith.constant 0.000000e+00 : f32
    %67 = vector.broadcast %cst_28 : f32 to vector<32x16xf32>
    %68 = arith.subf %67, %64 : vector<32x16xf32>
    %69 = arith.select %66, %68, %64 : vector<32x16xi1>, vector<32x16xf32>
    %cst_29 = arith.constant 1.000000e+00 : f32
    %70 = vector.broadcast %cst_29 : f32 to vector<32x16xf32>
    %71 = arith.addf %70, %69 : vector<32x16xf32>
    %72 = arith.mulf %34, %71 : vector<32x16xf32>
    %c232 = arith.constant 232 : index
    %c0_30 = arith.constant 0 : index
    %73 = vector.load %arg1[%c232, %c0_30] : memref<264x16xf32, #tpu.memory_space<vmem>>, vector<32x16xf32>
    %74 = arith.addf %72, %73 : vector<32x16xf32>
    %75 = vector.shape_cast %74 : vector<32x16xf32> to vector<2x16x16xf32>
    %cst_31 = arith.constant dense<0xFF800000> : vector<2x16xf32>
    %76 = vector.multi_reduction <maximumf>, %75, %cst_31 [1] : vector<2x16x16xf32> to vector<2x16xf32>
    %c208 = arith.constant 208 : index
    %c0_32 = arith.constant 0 : index
    %77 = vector.load %arg1[%c208, %c0_32] : memref<264x16xf32, #tpu.memory_space<vmem>>, vector<16x16xf32>
    %c224 = arith.constant 224 : index
    %c0_33 = arith.constant 0 : index
    %78 = vector.load %arg1[%c224, %c0_33] : memref<264x16xf32, #tpu.memory_space<vmem>>, vector<1x16xf32>
    %cst_34 = arith.constant dense<0.000000e+00> : vector<2x16xf32>
    %79 = tpu.matmul %76, %77, %cst_34 {dimension_numbers = #tpu.dot_dimension_numbers<[1], [0], [0], [1], [0, 0, 1, 1], [], []>} : vector<2x16xf32>, vector<16x16xf32>, vector<2x16xf32> -> vector<2x16xf32>
    %80 = vector.broadcast %78 : vector<1x16xf32> to vector<2x16xf32>
    %81 = arith.addf %79, %80 : vector<2x16xf32>
    %c0_35 = arith.constant 0 : index
    %c0_36 = arith.constant 0 : index
    %82 = vector.load %arg2[%c0_35, %c0_36] : memref<2x16xf32, #tpu.memory_space<vmem>>, vector<2x16xf32>
    tpu.vector_store %arg2[%c0_35, %c0_36], %81 {strides = array<i32>} : memref<2x16xf32, #tpu.memory_space<vmem>>, vector<2x16xf32>,
    return
  }
}

</mosaic_0001>

<llo_original>
// kernel: mtcnn_forward.1
$region0: #{mtcnn_forward.1}
  #allocation0 [shape = 'u32[]', space=smem, size = 0x4, offset = 0x4, fixed_abs, tag = 'smem constant byte address 0x4 - core index']
  #allocation1 [shape = 'u32[144,128]{1,0:T(1,128)}', space=vmem, size = 0x12000, scoped, tag = 'internal scratch']
  %s0 = inlined_call_operand.vmem [shape: s32[32,4], index: 0, kind: input, shape index: {}]
  %s1 = inlined_call_operand.vmem [shape: f32[264,16], index: 1, kind: input, shape index: {}]
  %s2 = inlined_call_operand.hbm [shape: f32[2,16], index: 2, kind: output, shape index: {}]
  %s3 = sld [smem:[#allocation0]]
  $region18: #{mtcnn_forward.1} parent=0
    _
  %s5 = ssub.s32 1, %s3
  %s6 = scalar_select 0, %s5, %s3
  $region1: #{mtcnn_forward.1} parent=0
    #allocation2 [shape = 'u8[1024]{0}', space=vmem, size = 0x400, scoped, tag = 'output window, operand 0, single buffered']
    #allocation3 [shape = 's32[1]{0}', space=sflag, size = 0x4, scoped, tag = 'scoped memory for mtcnn_forward.1']
    %7 = vsyncpa [#allocation3], 0
    // Predicated region
    $region2: #{mtcnn_forward.1} parent=1 // pred_check
      _
    $region3: #{mtcnn_forward.1} parent=1 // pred_check_branch
      %9 = sbr.rel (0) target = $region5
    $region4: #{mtcnn_forward.1} parent=1 // pred_region
      _
    $region5: #{mtcnn_forward.1} parent=1 // pred_fallthru
      _
    // Predicated region
    $region6: #{mtcnn_forward.1} parent=1 // pred_check
      _
    $region7: #{mtcnn_forward.1} parent=1 // pred_check_branch
      %11 = sbr.rel (0) target = $region9
    $region8: #{mtcnn_forward.1} parent=1 // pred_region
      _
    $region9: #{mtcnn_forward.1} parent=1 // pred_fallthru
      _
    %v12 = vlaneseq
    %v13 = vand.u32 %v12, 127
    %v14 = vadd.s32 %v13, 128
    %v15 = vld [vmem:[%s0] sm:$0xff]
    %v16 = vld [vmem:[%s0 + $0x8] sm:$0xff]
    %v17 = vld [vmem:[%s0 + $0x10] sm:$0xff]
    %v18 = vld [vmem:[%s0 + $0x18] sm:$0xff]
    %19 = vset.pattern.permute.xlu0 0
    %20 = vperm.xlu0 %19, %v15
    %v21 = vpop.permute.xlu0 %20
    %22 = vset.pattern.permute.xlu0 0
    %23 = vperm.xlu0 %22, %v16
    %v24 = vpop.permute.xlu0 %23
    %25 = vset.pattern.permute.xlu0 0
    %26 = vperm.xlu0 %25, %v17
    %v27 = vpop.permute.xlu0 %26
    %28 = vset.pattern.permute.xlu0 0
    %29 = vperm.xlu0 %28, %v18
    %v30 = vpop.permute.xlu0 %29
    %vm31 = vcmp.eq.s32.totalorder %v21, %v13
    %vm32 = vcmp.eq.s32.totalorder %v21, %v14
    %vm33 = vcmp.eq.s32.totalorder %v24, %v13
    %vm34 = vcmp.eq.s32.totalorder %v24, %v14
    %vm35 = vcmp.eq.s32.totalorder %v27, %v13
    %vm36 = vcmp.eq.s32.totalorder %v27, %v14
    %vm37 = vcmp.eq.s32.totalorder %v30, %v13
    %vm38 = vcmp.eq.s32.totalorder %v30, %v14
    %v39 = vsel %vm31, 1.0, 0.0
    %v40 = vsel %vm32, 1.0, 0.0
    %v41 = vsel %vm33, 1.0, 0.0
    %v42 = vsel %vm34, 1.0, 0.0
    %v43 = vsel %vm35, 1.0, 0.0
    %v44 = vsel %vm36, 1.0, 0.0
    %v45 = vsel %vm37, 1.0, 0.0
    %v46 = vsel %vm38, 1.0, 0.0
    %47 = vset.pattern.permute.xlu0 1
    %48 = vperm.xlu0 %47, %v15
    %v49 = vpop.permute.xlu0 %48
    %50 = vset.pattern.permute.xlu0 1
    %51 = vperm.xlu0 %50, %v16
    %v52 = vpop.permute.xlu0 %51
    %53 = vset.pattern.permute.xlu0 1
    %54 = vperm.xlu0 %53, %v17
    %v55 = vpop.permute.xlu0 %54
    %56 = vset.pattern.permute.xlu0 1
    %57 = vperm.xlu0 %56, %v18
    %v58 = vpop.permute.xlu0 %57
    %vm59 = vcmp.eq.s32.totalorder %v49, %v13
    %vm60 = vcmp.eq.s32.totalorder %v49, %v14
    %vm61 = vcmp.eq.s32.totalorder %v52, %v13
    %vm62 = vcmp.eq.s32.totalorder %v52, %v14
    %vm63 = vcmp.eq.s32.totalorder %v55, %v13
    %vm64 = vcmp.eq.s32.totalorder %v55, %v14
    %vm65 = vcmp.eq.s32.totalorder %v58, %v13
    %vm66 = vcmp.eq.s32.totalorder %v58, %v14
    %v67 = vsel %vm59, 1.0, 0.0
    %v68 = vsel %vm60, 1.0, 0.0
    %v69 = vsel %vm61, 1.0, 0.0
    %v70 = vsel %vm62, 1.0, 0.0
    %v71 = vsel %vm63, 1.0, 0.0
    %v72 = vsel %vm64, 1.0, 0.0
    %v73 = vsel %vm65, 1.0, 0.0
    %v74 = vsel %vm66, 1.0, 0.0
    %v75 = vadd.f32 %v39, %v67
    %v76 = vadd.f32 %v40, %v68
    %v77 = vadd.f32 %v41, %v69
    %v78 = vadd.f32 %v42, %v70
    %v79 = vadd.f32 %v43, %v71
    %v80 = vadd.f32 %v44, %v72
    %v81 = vadd.f32 %v45, %v73
    %v82 = vadd.f32 %v46, %v74
    %83 = vset.pattern.permute.xlu0 2
    %84 = vperm.xlu0 %83, %v15
    %v85 = vpop.permute.xlu0 %84
    %86 = vset.pattern.permute.xlu0 2
    %87 = vperm.xlu0 %86, %v16
    %v88 = vpop.permute.xlu0 %87
    %89 = vset.pattern.permute.xlu0 2
    %90 = vperm.xlu0 %89, %v17
    %v91 = vpop.permute.xlu0 %90
    %92 = vset.pattern.permute.xlu0 2
    %93 = vperm.xlu0 %92, %v18
    %v94 = vpop.permute.xlu0 %93
    %vm95 = vcmp.eq.s32.totalorder %v85, %v13
    %vm96 = vcmp.eq.s32.totalorder %v85, %v14
    %vm97 = vcmp.eq.s32.totalorder %v88, %v13
    %vm98 = vcmp.eq.s32.totalorder %v88, %v14
    %vm99 = vcmp.eq.s32.totalorder %v91, %v13
    %vm100 = vcmp.eq.s32.totalorder %v91, %v14
    %vm101 = vcmp.eq.s32.totalorder %v94, %v13
    %vm102 = vcmp.eq.s32.totalorder %v94, %v14
    %v103 = vsel %vm95, 1.0, 0.0
    %v104 = vsel %vm96, 1.0, 0.0
    %v105 = vsel %vm97, 1.0, 0.0
    %v106 = vsel %vm98, 1.0, 0.0
    %v107 = vsel %vm99, 1.0, 0.0
    %v108 = vsel %vm100, 1.0, 0.0
    %v109 = vsel %vm101, 1.0, 0.0
    %v110 = vsel %vm102, 1.0, 0.0
    %v111 = vadd.f32 %v75, %v103
    %v112 = vadd.f32 %v76, %v104
    %v113 = vadd.f32 %v77, %v105
    %v114 = vadd.f32 %v78, %v106
    %v115 = vadd.f32 %v79, %v107
    %v116 = vadd.f32 %v80, %v108
    %v117 = vadd.f32 %v81, %v109
    %v118 = vadd.f32 %v82, %v110
    %119 = vset.pattern.permute.xlu0 3
    %120 = vperm.xlu0 %119, %v15
    %v121 = vpop.permute.xlu0 %120
    %122 = vset.pattern.permute.xlu0 3
    %123 = vperm.xlu0 %122, %v16
    %v124 = vpop.permute.xlu0 %123
    %125 = vset.pattern.permute.xlu0 3
    %126 = vperm.xlu0 %125, %v17
    %v127 = vpop.permute.xlu0 %126
    %128 = vset.pattern.permute.xlu0 3
    %129 = vperm.xlu0 %128, %v18
    %v130 = vpop.permute.xlu0 %129
    %vm131 = vcmp.eq.s32.totalorder %v121, %v13
    %vm132 = vcmp.eq.s32.totalorder %v121, %v14
    %vm133 = vcmp.eq.s32.totalorder %v124, %v13
    %vm134 = vcmp.eq.s32.totalorder %v124, %v14
    %vm135 = vcmp.eq.s32.totalorder %v127, %v13
    %vm136 = vcmp.eq.s32.totalorder %v127, %v14
    %vm137 = vcmp.eq.s32.totalorder %v130, %v13
    %vm138 = vcmp.eq.s32.totalorder %v130, %v14
    %v139 = vsel %vm131, 1.0, 0.0
    %v140 = vsel %vm132, 1.0, 0.0
    %v141 = vsel %vm133, 1.0, 0.0
    %v142 = vsel %vm134, 1.0, 0.0
    %v143 = vsel %vm135, 1.0, 0.0
    %v144 = vsel %vm136, 1.0, 0.0
    %v145 = vsel %vm137, 1.0, 0.0
    %v146 = vsel %vm138, 1.0, 0.0
    %v147 = vadd.f32 %v111, %v139
    %v148 = vadd.f32 %v112, %v140
    %v149 = vadd.f32 %v113, %v141
    %v150 = vadd.f32 %v114, %v142
    %v151 = vadd.f32 %v115, %v143
    %v152 = vadd.f32 %v116, %v144
    %v153 = vadd.f32 %v117, %v145
    %v154 = vadd.f32 %v118, %v146
    %v155 = vld [vmem:[%s1] sm:$0xff]
    %v156 = vld [vmem:[%s1 + $0x8] sm:$0xff]
    %v157 = vld [vmem:[%s1 + $0x10] sm:$0xff]
    %v158 = vld [vmem:[%s1 + $0x18] sm:$0xff]
    %v159 = vld [vmem:[%s1 + $0x20] sm:$0xff]
    %v160 = vld [vmem:[%s1 + $0x28] sm:$0xff]
    %v161 = vld [vmem:[%s1 + $0x30] sm:$0xff]
    %v162 = vld [vmem:[%s1 + $0x38] sm:$0xff]
    %v163 = vld [vmem:[%s1 + $0x40] sm:$0xff]
    %v164 = vld [vmem:[%s1 + $0x48] sm:$0xff]
    %v165 = vld [vmem:[%s1 + $0x50] sm:$0xff]
    %v166 = vld [vmem:[%s1 + $0x58] sm:$0xff]
    %v167 = vld [vmem:[%s1 + $0x60] sm:$0xff]
    %v168 = vld [vmem:[%s1 + $0x68] sm:$0xff]
    %v169 = vld [vmem:[%s1 + $0x70] sm:$0xff]
    %v170 = vld [vmem:[%s1 + $0x78] sm:$0xff]
    %v171 = vld [vmem:[%s1 + $0x80] sm:$0xff]
    %v172 = vld [vmem:[%s1 + $0x88] sm:$0xff]
    %v173 = vld [vmem:[%s1 + $0x90] sm:$0xff]
    %v174 = vld [vmem:[%s1 + $0x98] sm:$0xff]
    %v175 = vld [vmem:[%s1 + $0xa0] sm:$0xff]
    %v176 = vld [vmem:[%s1 + $0xa8] sm:$0xff]
    %v177 = vld [vmem:[%s1 + $0xb0] sm:$0xff]
    %v178 = vld [vmem:[%s1 + $0xb8] sm:$0xff]
    %v179 = vld [vmem:[%s1 + $0xc0] sm:$0xff]
    %v180 = vld [vmem:[%s1 + $0xc8] sm:$0x1]
    %v181 = vlaneseq
    %v182 = vshrl.u32 %v181, 7
    %v183 = vsub.s32 0, %v182
    %v184 = vrot.slane %v180, %v183
    %vm185 = vcmask 588800
    %v187 = vsel %vm185, %v148, 0
    %v190 = vsel %vm185, %v150, 0
    %v193 = vsel %vm185, %v152, 0
    %v196 = vsel %vm185, %v154, 0
    %198 = vmatprep.subr.mxu0 0.0
    %199 = vmatpush1.msra.mxu0 %v155
    %200 = vmatprep.subr.mxu0 0.0
    %201 = vmatpush1.msra.mxu0 %v156
    %202 = vmatprep.subr.mxu0 0.0
    %203 = vmatpush1.msra.mxu0 %v157
    %204 = vmatprep.subr.mxu0 0.0
    %205 = vmatpush1.msra.mxu0 %v158
    %206 = vmatprep.subr.mxu0 0.0
    %207 = vmatpush1.msra.mxu0 %v159
    %208 = vmatprep.subr.mxu0 0.0
    %209 = vmatpush1.msra.mxu0 %v160
    %210 = vmatprep.subr.mxu0 0.0
    %211 = vmatpush1.msra.mxu0 %v161
    %212 = vmatprep.subr.mxu0 0.0
    %213 = vmatpush1.msra.mxu0 %v162
    %214 = vmatprep.subr.mxu0 0.0
    %215 = vmatpush1.msra.mxu0 %v163
    %216 = vmatprep.subr.mxu0 0.0
    %217 = vmatpush1.msra.mxu0 %v164
    %218 = vmatprep.subr.mxu0 0.0
    %219 = vmatpush1.msra.mxu0 %v165
    %220 = vmatprep.subr.mxu0 0.0
    %221 = vmatpush1.msra.mxu0 %v166
    %222 = vmatprep.subr.mxu0 0.0
    %223 = vmatpush1.msra.mxu0 %v167
    %224 = vmatprep.subr.mxu0 0.0
    %225 = vmatpush1.msra.mxu0 %v168
    %226 = vmatprep.subr.mxu0 0.0
    %227 = vmatpush1.msra.mxu0 %v169
    %228 = vmatprep.subr.mxu0 0.0
    %229 = vmatpush1.msra.mxu0 %v170
    %230 = vmatprep.subr.mxu0 0.0
    %231 = vmatpush1.msra.mxu0 %v171
    %232 = vmatprep.subr.mxu0 0.0
    %233 = vmatpush1.msra.mxu0 %v172
    %234 = vmatprep.subr.mxu0 0.0
    %235 = vmatpush1.msra.mxu0 %v173
    %236 = vmatprep.subr.mxu0 0.0
    %237 = vmatpush1.msra.mxu0 %v174
    %238 = vmatprep.subr.mxu0 0.0
    %239 = vmatpush1.msra.mxu0 %v175
    %240 = vmatprep.subr.mxu0 0.0
    %241 = vmatpush1.msra.mxu0 %v176
    %242 = vmatprep.subr.mxu0 0.0
    %243 = vmatpush1.msra.mxu0 %v177
    %244 = vmatprep.subr.mxu0 0.0
    %245 = vmatpush1.msra.mxu0 %v178
    %246 = vmatprep.subr.mxu0 0.0
    %247 = vmatpush1.msra.mxu0 %v179
    %248 = vmatprep.subr.mxu0 0.0
    %249 = vmatpush1.msra.mxu0 0.0
    %250 = vmatprep.subr.mxu0 0.0
    %251 = vmatpush1.msra.mxu0 0.0
    %252 = vmatprep.subr.mxu0 0.0
    %253 = vmatpush1.msra.mxu0 0.0
    %254 = vmatprep.subr.mxu0 0.0
    %255 = vmatpush1.msra.mxu0 0.0
    %256 = vmatprep.subr.mxu0 0.0
    %257 = vmatpush1.msra.mxu0 0.0
    %258 = vmatprep.subr.mxu0 0.0
    %259 = vmatpush1.msra.mxu0 0.0
    %260 = vmatprep.subr.mxu0 0.0
    %261 = vmatpush1.msra.mxu0 0.0
    %262 = vmatprep.mubr.f32.mxu0 %v187
    %263 = vmatmul.mubr.f32.gmra.mrb[0].mxu0 %v147
    %v264 = vpop.f32.mrb[0].mxu0
    %v265 = vadd.f32 %v184, %v264
    %v266 = vpop.f32.mrb[0].mxu0
    %267 = vmatprep.mubr.f32.mxu0 %v190
    %268 = vmatmul.mubr.f32.gmra.mrb[0].mxu0 %v149
    %v269 = vpop.f32.mrb[0].mxu0
    %v270 = vadd.f32 %v184, %v269
    %v271 = vpop.f32.mrb[0].mxu0
    %272 = vmatprep.mubr.f32.mxu0 %v193
    %273 = vmatmul.mubr.f32.gmra.mrb[0].mxu0 %v151
    %v274 = vpop.f32.mrb[0].mxu0
    %v275 = vadd.f32 %v184, %v274
    %v276 = vpop.f32.mrb[0].mxu0
    %277 = vmatprep.mubr.f32.mxu0 %v196
    %278 = vmatmul.mubr.f32.gmra.mrb[0].mxu0 %v153
    %v279 = vpop.f32.mrb[0].mxu0
    %v280 = vadd.f32 %v184, %v279
    %v281 = vpop.f32.mrb[0].mxu0
    %282 = vdwg.mxu0
    %v283 = vmul.f32 %v265, 0.5
    %v284 = vmul.f32 %v270, 0.5
    %v285 = vmul.f32 %v275, 0.5
    %v286 = vmul.f32 %v280, 0.5
    %v287 = vmul.f32 %v265, 0.70710677
    %v288 = vmul.f32 %v270, 0.70710677
    %v289 = vmul.f32 %v275, 0.70710677
    %v290 = vmul.f32 %v280, 0.70710677
    %v291 = vand.u32 2147483647, %v287
    %v292 = vand.u32 2147483647, %v288
    %v293 = vand.u32 2147483647, %v289
    %v294 = vand.u32 2147483647, %v290
    %v295 = vmul.f32 %v291, 0.3275911
    %v296 = vmul.f32 %v292, 0.3275911
    %v297 = vmul.f32 %v293, 0.3275911
    %v298 = vmul.f32 %v294, 0.3275911
    %v299 = vadd.f32 %v295, 1.0
    %v300 = vadd.f32 %v296, 1.0
    %v301 = vadd.f32 %v297, 1.0
    %v302 = vadd.f32 %v298, 1.0
    %v303 = vrcp.pop %v299
    %v304 = vmul.f32 1.0, %v303
    %v305 = vrcp.pop %v300
    %v306 = vmul.f32 1.0, %v305
    %v307 = vrcp.pop %v301
    %v308 = vmul.f32 1.0, %v307
    %v309 = vrcp.pop %v302
    %v310 = vmul.f32 1.0, %v309
    %v311 = vmul.f32 %v304, 1.0614054
    %v312 = vmul.f32 %v306, 1.0614054
    %v313 = vmul.f32 %v308, 1.0614054
    %v314 = vmul.f32 %v310, 1.0614054
    %v315 = vadd.f32 %v311, -1.4531521
    %v316 = vadd.f32 %v312, -1.4531521
    %v317 = vadd.f32 %v313, -1.4531521
    %v318 = vadd.f32 %v314, -1.4531521
    %v319 = vmul.f32 %v315, %v304
    %v320 = vmul.f32 %v316, %v306
    %v321 = vmul.f32 %v317, %v308
    %v322 = vmul.f32 %v318, %v310
    %v323 = vadd.f32 %v319, 1.4214138
    %v324 = vadd.f32 %v320, 1.4214138
    %v325 = vadd.f32 %v321, 1.4214138
    %v326 = vadd.f32 %v322, 1.4214138
    %v327 = vmul.f32 %v323, %v304
    %v328 = vmul.f32 %v324, %v306
    %v329 = vmul.f32 %v325, %v308
    %v330 = vmul.f32 %v326, %v310
    %v331 = vadd.f32 %v327, -0.28449672
    %v332 = vadd.f32 %v328, -0.28449672
    %v333 = vadd.f32 %v329, -0.28449672
    %v334 = vadd.f32 %v330, -0.28449672
    %v335 = vmul.f32 %v331, %v304
    %v336 = vmul.f32 %v332, %v306
    %v337 = vmul.f32 %v333, %v308
    %v338 = vmul.f32 %v334, %v310
    %v339 = vadd.f32 %v335, 0.2548296
    %v340 = vadd.f32 %v336, 0.2548296
    %v341 = vadd.f32 %v337, 0.2548296
    %v342 = vadd.f32 %v338, 0.2548296
    %v343 = vmul.f32 %v339, %v304
    %v344 = vmul.f32 %v340, %v306
    %v345 = vmul.f32 %v341, %v308
    %v346 = vmul.f32 %v342, %v310
    %v347 = vsub.f32 0.0, %v291
    %v348 = vsub.f32 0.0, %v292
    %v349 = vsub.f32 0.0, %v293
    %v350 = vsub.f32 0.0, %v294
    %v351 = vmul.f32 %v347, %v291
    %v352 = vmul.f32 %v348, %v292
    %v353 = vmul.f32 %v349, %v293
    %v354 = vmul.f32 %v350, %v294
    %v355 = vmul.f32 %v351, 1.442695
    %v356 = vpow.pop %v355
    %v357 = vmul.f32 %v352, 1.442695
    %v358 = vpow.pop %v357
    %v359 = vmul.f32 %v353, 1.442695
    %v360 = vpow.pop %v359
    %v361 = vmul.f32 %v354, 1.442695
    %v362 = vpow.pop %v361
    %v363 = vmul.f32 %v343, %v356
    %v364 = vmul.f32 %v344, %v358
    %v365 = vmul.f32 %v345, %v360
    %v366 = vmul.f32 %v346, %v362
    %v367 = vsub.f32 1.0, %v363
    %v368 = vsub.f32 1.0, %v364
    %v369 = vsub.f32 1.0, %v365
    %v370 = vsub.f32 1.0, %v366
    %vm371 = vcmp.lt.f32.partialorder %v287, 0.0
    %vm372 = vcmp.lt.f32.partialorder %v288, 0.0
    %vm373 = vcmp.lt.f32.partialorder %v289, 0.0
    %vm374 = vcmp.lt.f32.partialorder %v290, 0.0
    %v375 = vsub.f32 0.0, %v367
    %v376 = vsub.f32 0.0, %v368
    %v377 = vsub.f32 0.0, %v369
    %v378 = vsub.f32 0.0, %v370
    %v379 = vsel %vm371, %v375, %v367
    %v380 = vsel %vm372, %v376, %v368
    %v381 = vsel %vm373, %v377, %v369
    %v382 = vsel %vm374, %v378, %v370
    %v383 = vadd.f32 %v379, 1.0
    %v384 = vadd.f32 %v380, 1.0
    %v385 = vadd.f32 %v381, 1.0
    %v386 = vadd.f32 %v382, 1.0
    %v387 = vmul.f32 %v283, %v383
    %v388 = vmul.f32 %v284, %v384
    %v389 = vmul.f32 %v285, %v385
    %v390 = vmul.f32 %v286, %v386
    %v391 = vld [vmem:[%s1 + $0xe8] sm:$0xff]
    %v392 = vld [vmem:[%s1 + $0xf0] sm:$0xff]
    %v393 = vld [vmem:[%s1 + $0xf8] sm:$0xff]
    %v394 = vld [vmem:[%s1 + $0x100] sm:$0xff]
    %v395 = vadd.f32 %v387, %v391
    %v396 = vadd.f32 %v388, %v392
    %v397 = vadd.f32 %v389, %v393
    %v398 = vadd.f32 %v390, %v394
    %vm399 = vcmask 130048
    %v400 = vsel %vm399, %v395, -inf
    %v401 = vsel %vm399, %v396, -inf
    %v402 = vmax.f32 %v400, %v401
    %v403 = vrot.slane %v402, 4
    %v404 = vmax.f32 %v402, %v403
    %v405 = vrot.slane %v404, 2
    %v406 = vmax.f32 %v404, %v405
    %v407 = vrot.slane %v406, 1
    %v408 = vmax.f32 %v406, %v407
    %v409 = vsel %vm399, %v397, -inf
    %v410 = vsel %vm399, %v398, -inf
    %v411 = vmax.f32 %v409, %v410
    %v412 = vrot.slane %v411, 4
    %v413 = vmax.f32 %v411, %v412
    %v414 = vrot.slane %v413, 2
    %v415 = vmax.f32 %v413, %v414
    %v416 = vrot.slane %v415, 1
    %v417 = vmax.f32 %v415, %v416
    %v418 = vld [vmem:[%s1 + $0xd0] sm:$0xff]
    %v419 = vld [vmem:[%s1 + $0xd8] sm:$0xff]
    %v420 = vld [vmem:[%s1 + $0xe0] sm:$0x1]
    %v421 = vlaneseq
    %v422 = vshrl.u32 %v421, 7
    %v423 = vsub.s32 0, %v422
    %v424 = vrot.slane %v420, %v423
    %vm427 = vcmask 1041409
    %v428 = vsel %vm427, %v417, %v408
    %v429 = vsel %vm399, %v428, 0
    %431 = vmatprep.subr.mxu0 0.0
    %432 = vmatpush1.msra.mxu0 %v418
    %433 = vmatprep.subr.mxu0 0.0
    %434 = vmatpush1.msra.mxu0 %v419
    %435 = vmatprep.subr.mxu0 0.0
    %436 = vmatpush1.msra.mxu0 0.0
    %437 = vmatprep.subr.mxu0 0.0
    %438 = vmatpush1.msra.mxu0 0.0
    %439 = vmatprep.subr.mxu0 0.0
    %440 = vmatpush1.msra.mxu0 0.0
    %441 = vmatprep.subr.mxu0 0.0
    %442 = vmatpush1.msra.mxu0 0.0
    %443 = vmatprep.subr.mxu0 0.0
    %444 = vmatpush1.msra.mxu0 0.0
    %445 = vmatprep.subr.mxu0 0.0
    %446 = vmatpush1.msra.mxu0 0.0
    %447 = vmatprep.subr.mxu0 0.0
    %448 = vmatpush1.msra.mxu0 0.0
    %449 = vmatprep.subr.mxu0 0.0
    %450 = vmatpush1.msra.mxu0 0.0
    %451 = vmatprep.subr.mxu0 0.0
    %452 = vmatpush1.msra.mxu0 0.0
    %453 = vmatprep.subr.mxu0 0.0
    %454 = vmatpush1.msra.mxu0 0.0
    %455 = vmatprep.subr.mxu0 0.0
    %456 = vmatpush1.msra.mxu0 0.0
    %457 = vmatprep.subr.mxu0 0.0
    %458 = vmatpush1.msra.mxu0 0.0
    %459 = vmatprep.subr.mxu0 0.0
    %460 = vmatpush1.msra.mxu0 0.0
    %461 = vmatprep.subr.mxu0 0.0
    %462 = vmatpush1.msra.mxu0 0.0
    %463 = vmatprep.subr.mxu0 0.0
    %464 = vmatpush1.msra.mxu0 0.0
    %465 = vmatprep.subr.mxu0 0.0
    %466 = vmatpush1.msra.mxu0 0.0
    %467 = vmatprep.subr.mxu0 0.0
    %468 = vmatpush1.msra.mxu0 0.0
    %469 = vmatprep.subr.mxu0 0.0
    %470 = vmatpush1.msra.mxu0 0.0
    %471 = vmatprep.subr.mxu0 0.0
    %472 = vmatpush1.msra.mxu0 0.0
    %473 = vmatprep.subr.mxu0 0.0
    %474 = vmatpush1.msra.mxu0 0.0
    %475 = vmatprep.subr.mxu0 0.0
    %476 = vmatpush1.msra.mxu0 0.0
    %477 = vmatprep.subr.mxu0 0.0
    %478 = vmatpush1.msra.mxu0 0.0
    %479 = vmatprep.subr.mxu0 0.0
    %480 = vmatpush1.msra.mxu0 0.0
    %481 = vmatprep.subr.mxu0 0.0
    %482 = vmatpush1.msra.mxu0 0.0
    %483 = vmatprep.subr.mxu0 0.0
    %484 = vmatpush1.msra.mxu0 0.0
    %485 = vmatprep.subr.mxu0 0.0
    %486 = vmatpush1.msra.mxu0 0.0
    %487 = vmatprep.subr.mxu0 0.0
    %488 = vmatpush1.msra.mxu0 0.0
    %489 = vmatprep.subr.mxu0 0.0
    %490 = vmatpush1.msra.mxu0 0.0
    %491 = vmatprep.subr.mxu0 0.0
    %492 = vmatpush1.msra.mxu0 0.0
    %493 = vmatprep.subr.mxu0 0.0
    %494 = vmatpush1.msra.mxu0 0.0
    %495 = vmatprep.mubr.f32.mxu0 0.0
    %496 = vmatmul.mubr.f32.gmra.mrb[0].mxu0 %v429
    %v497 = vpop.f32.mrb[0].mxu0
    %v498 = vadd.f32 %v424, %v497
    %v499 = vpop.f32.mrb[0].mxu0
    %500 = vdwg.mxu0
    %vm501 = vcmask 123904
    %502 = vst.msk [vmem:[#allocation2] sm:$0x3] %vm501, %v498
    // Predicated region
    $region10: #{mtcnn_forward.1} parent=1 // pred_check
      _
    $region11: #{mtcnn_forward.1} parent=1 // pred_check_branch
      %504 = sbr.rel (0) target = $region13
    $region12: #{mtcnn_forward.1} parent=1 // pred_region
      %s506 = ssub.s32 32, 32
      %507 = vsyncadd [#allocation3], %s506
      %s509 = sshll.u32 [#allocation2], 4
      %s510 = int_to_ptr.vmem [resolvable:$true] %s509
      %512 = dma.vmem_to_hbm [thread:$0]  %s510, 32, %s2, [#allocation3]
    $region13: #{mtcnn_forward.1} parent=1 // pred_fallthru
      _
    // Predicated region
    $region14: #{mtcnn_forward.1} parent=1 // pred_check
      _
    $region15: #{mtcnn_forward.1} parent=1 // pred_check_branch
      %514 = sbr.rel (0) target = $region17
    $region16: #{mtcnn_forward.1} parent=1 // pred_region
      %515 = dma.done [#allocation3], 32
    $region17: #{mtcnn_forward.1} parent=1 // pred_fallthru
      _
    %516 = vsyncpa [#allocation3], 1

</llo_original>
